<compile_context>
chip_gen: v7x
topology: tpu7x:2x2x1
jax: 0.10.0
libtpu: 0.0.40
codegen_flags: <defaults>
</compile_context>

<pallas_src>
import jax
import jax.numpy as jnp
from jax.experimental import pallas as pl
from jax.experimental.pallas import tpu as pltpu

LANE = 128
SUBLANE = 8


def _round_up(n, m):
    return ((n + m - 1) // m) * m


def _cdiv(a, b):
    return (a + b - 1) // b


def _device_kind():
    try:
        return jax.devices()[0].device_kind.lower()
    except Exception:
        return ""


def _sigmoid(x):
    # sigmoid(x) = 0.5 * tanh(0.5 * x) + 0.5
    # tanh is a single EUP op; the scale/shift is cheap VALU work with slack.
    half = jnp.asarray(0.5, dtype=x.dtype)
    return half * jnp.tanh(half * x) + half


def _make_mlp_kernel(act_dtype, mxu_dtype):
    """Fused 4-layer MLP: (Linear + Sigmoid) x3 -> Linear.

    Matmuls take mxu_dtype (bf16) operands with f32 accumulation; the bias
    add is f32; the sigmoid runs in act_dtype (bf16 on v6e/v7x, f32 on v5e).
    All weights live in VMEM for the whole grid -> fully fused per batch tile.
    """

    def kernel(x_ref,
               w1_ref, b1_ref,
               w2_ref, b2_ref,
               w3_ref, b3_ref,
               w4_ref, b4_ref,
               o_ref):
        def hidden_layer(h, w_ref, b_ref):
            z = jnp.dot(h, w_ref[...], preferred_element_type=jnp.float32)
            z = z + b_ref[...]                       # f32 bias add
            a = _sigmoid(z.astype(act_dtype))        # tanh on EUP
            return a.astype(mxu_dtype)               # no-op when act==mxu

        # Dropout == identity at inference.
        h = hidden_layer(x_ref[...], w1_ref, b1_ref)
        h = hidden_layer(h, w2_ref, b2_ref)
        h = hidden_layer(h, w3_ref, b3_ref)

        # Output layer: Linear (no activation).
        y = jnp.dot(h, w4_ref[...], preferred_element_type=jnp.float32)
        y = y + b4_ref[...]
        o_ref[...] = y.astype(o_ref.dtype)

    return kernel


def simple_neural_network_forward(x, params, *, block_batch=None,
                                  mxu_dtype=jnp.bfloat16):
    """Run the fused MLP Pallas kernel.

    x:      [B, input_size] float32
    params: dict with w1..w4 ([in, out], f32) and b1..b4 ([1, out], f32)
    Returns [B, output_size] float32.
    """
    B, in_features = x.shape
    out_size = params["w4"].shape[1]

    kind = _device_kind()
    is_v7x = "v7" in kind
    # bf16 VPU/EUP exists on v6e/v7x; v5e (and older) keep elementwise in f32.
    act_dtype = jnp.bfloat16 if ("v6" in kind or "v7" in kind) else jnp.float32

    # ---- pad feature dims to 128-lane multiples (zero padding is inert) ----
    in_pad = _round_up(in_features, LANE)
    dims = [in_pad]
    ws, bs = [], []
    for idx in range(1, 5):
        w = params[f"w{idx}"]
        b = params[f"b{idx}"]
        fin, fout = w.shape
        fout_pad = _round_up(fout, LANE)
        # Padded weight ROWS are zero -> padded lanes of the previous layer's
        # activation (sigmoid(0)=0.5) contribute nothing.  Keep this invariant.
        w_p = jnp.pad(w, ((0, dims[-1] - fin), (0, fout_pad - fout)))
        b_p = jnp.pad(b, ((0, 0), (0, fout_pad - fout)))
        ws.append(w_p.astype(mxu_dtype))     # MXU operands in bf16
        bs.append(b_p.astype(jnp.float32))   # bias add stays f32
        dims.append(fout_pad)
    out_pad = dims[-1]

    # ---- batch tile: minimal padding, chip-aware cap, >=2 steps on v7x -----
    if block_batch is None:
        cap = 1024 if is_v7x else 2048      # v7x: 64 MiB VMEM + dual-TC split
        n_steps = max(1, _cdiv(B, cap))
        if is_v7x and B > 128:
            n_steps = max(n_steps, 2)       # keep both TensorCores busy
        bm = _round_up(_cdiv(B, n_steps), SUBLANE)
    else:
        bm = _round_up(block_batch, SUBLANE)
    B_pad = _round_up(B, bm)

    x_p = jnp.pad(x, ((0, B_pad - B), (0, in_pad - in_features)))
    x_p = x_p.astype(mxu_dtype)

    grid = (B_pad // bm,)

    def _const_spec(arr):  # full-array block, same block every grid step
        return pl.BlockSpec(arr.shape, lambda i: (0, 0))

    in_specs = [pl.BlockSpec((bm, in_pad), lambda i: (i, 0))]
    flat_params = []
    for w_p, b_p in zip(ws, bs):
        in_specs += [_const_spec(w_p), _const_spec(b_p)]
        flat_params += [w_p, b_p]

    out_spec = pl.BlockSpec((bm, out_pad), lambda i: (i, 0))
    out_dtype = jnp.bfloat16   # halve HBM writeback; precision already bf16-bound

    flops = 2 * B_pad * (dims[0] * dims[1] + dims[1] * dims[2]
                         + dims[2] * dims[3] + dims[3] * dims[4])
    transcendentals = B_pad * (dims[1] + dims[2] + dims[3])
    bytes_accessed = (
        x_p.size * x_p.dtype.itemsize
        + sum(a.size * a.dtype.itemsize for a in flat_params)
        + B_pad * out_pad * jnp.dtype(out_dtype).itemsize)

    out_padded = pl.pallas_call(
        _make_mlp_kernel(act_dtype, mxu_dtype),
        out_shape=jax.ShapeDtypeStruct((B_pad, out_pad), out_dtype),
        grid=grid,
        in_specs=in_specs,
        out_specs=out_spec,
        compiler_params=pltpu.CompilerParams(
            dimension_semantics=("parallel",)),
        cost_estimate=pl.CostEstimate(
            flops=flops,
            transcendentals=transcendentals,
            bytes_accessed=bytes_accessed),
    )(x_p, *flat_params)

    # slice back to the logical (unpadded) output and restore f32 interface
    return out_padded[:B, :out_size].astype(jnp.float32)


def init_params(key, input_size, output_size, layers=(500, 100, 50)):
    """Deterministic init mimicking PyTorch nn.Linear default:
    U(-1/sqrt(fan_in), 1/sqrt(fan_in)) for both weights and biases.
    Weights are stored transposed as [in, out]."""
    dims = [input_size, *layers, output_size]
    params = {}
    for idx in range(len(dims) - 1):
        fan_in, fan_out = dims[idx], dims[idx + 1]
        key, kw, kb = jax.random.split(key, 3)
        bound = 1.0 / jnp.sqrt(jnp.float32(fan_in))
        params[f"w{idx + 1}"] = jax.random.uniform(
            kw, (fan_in, fan_out), jnp.float32, -bound, bound)
        params[f"b{idx + 1}"] = jax.random.uniform(
            kb, (1, fan_out), jnp.float32, -bound, bound)
    return params


def _reference_forward(x, params):
    """Plain-JAX f32 reference for correctness check."""
    h = jax.nn.sigmoid(x @ params["w1"] + params["b1"])
    h = jax.nn.sigmoid(h @ params["w2"] + params["b2"])
    h = jax.nn.sigmoid(h @ params["w3"] + params["b3"])
    return h @ params["w4"] + params["b4"]


if __name__ == "__main__":
    key = jax.random.PRNGKey(0)
    key, kx, kp = jax.random.split(key, 3)

    batch = 8
    input_size = 32
    output_size = 8

    x = jax.random.normal(kx, (batch, input_size), dtype=jnp.float32)
    params = init_params(kp, input_size, output_size, layers=(500, 100, 50))

    out = simple_neural_network_forward(x, params)
    out = jax.block_until_ready(out)

    ref = jax.block_until_ready(_reference_forward(x, params))
    assert out.shape == (batch, output_size)
    # bf16 MXU operands (+ bf16 elementwise on v6e/v7x, bf16 output) vs. an
    # f32 reference: a few 1e-3 absolute error is expected -> loose tolerance.
    assert jnp.allclose(out, ref, atol=2e-2, rtol=2e-2), "mismatch vs reference"

    print("KERNEL_OK")
</pallas_src>

<mosaic_0001>
module attributes {stable_mosaic.version = 11 : i64} {
  func.func @kernel(%arg0: i32, %arg1: memref<8x128xbf16, #tpu.memory_space<vmem>>, %arg2: memref<128x512xbf16, #tpu.memory_space<vmem>>, %arg3: memref<1x512xf32, #tpu.memory_space<vmem>>, %arg4: memref<512x128xbf16, #tpu.memory_space<vmem>>, %arg5: memref<1x128xf32, #tpu.memory_space<vmem>>, %arg6: memref<128x128xbf16, #tpu.memory_space<vmem>>, %arg7: memref<1x128xf32, #tpu.memory_space<vmem>>, %arg8: memref<128x128xbf16, #tpu.memory_space<vmem>>, %arg9: memref<1x128xf32, #tpu.memory_space<vmem>>, %arg10: memref<8x128xbf16, #tpu.memory_space<vmem>>) attributes {dimension_semantics = [#tpu.dimension_semantics<parallel>], iteration_bounds = array<i64: 1>, scalar_prefetch = 0 : i64, scratch_operands = 0 : i64, tpu.core_type = #tpu.core_type<tc>, window_params = [{transform_indices = @transform_0, window_bounds = array<i64: 8, 128>}, {pipeline_mode = #tpu.pipeline_mode<synchronous>, transform_indices = @transform_1, window_bounds = array<i64: 128, 512>}, {pipeline_mode = #tpu.pipeline_mode<synchronous>, transform_indices = @transform_2, window_bounds = array<i64: 1, 512>}, {pipeline_mode = #tpu.pipeline_mode<synchronous>, transform_indices = @transform_3, window_bounds = array<i64: 512, 128>}, {pipeline_mode = #tpu.pipeline_mode<synchronous>, transform_indices = @transform_4, window_bounds = array<i64: 1, 128>}, {pipeline_mode = #tpu.pipeline_mode<synchronous>, transform_indices = @transform_5, window_bounds = array<i64: 128, 128>}, {pipeline_mode = #tpu.pipeline_mode<synchronous>, transform_indices = @transform_6, window_bounds = array<i64: 1, 128>}, {pipeline_mode = #tpu.pipeline_mode<synchronous>, transform_indices = @transform_7, window_bounds = array<i64: 128, 128>}, {pipeline_mode = #tpu.pipeline_mode<synchronous>, transform_indices = @transform_8, window_bounds = array<i64: 1, 128>}, {transform_indices = @transform_9, window_bounds = array<i64: 8, 128>}]} {
    %c0 = arith.constant 0 : index
    %c0_0 = arith.constant 0 : index
    %0 = vector.load %arg1[%c0, %c0_0] : memref<8x128xbf16, #tpu.memory_space<vmem>>, vector<8x128xbf16>
    %c0_1 = arith.constant 0 : index
    %c0_2 = arith.constant 0 : index
    %1 = vector.load %arg2[%c0_1, %c0_2] : memref<128x512xbf16, #tpu.memory_space<vmem>>, vector<128x512xbf16>
    %cst = arith.constant dense<0.000000e+00> : vector<8x512xf32>
    %2 = tpu.matmul %0, %1, %cst {dimension_numbers = #tpu.dot_dimension_numbers<[1], [0], [0], [1], [0, 0, 1, 1], [], []>} : vector<8x128xbf16>, vector<128x512xbf16>, vector<8x512xf32> -> vector<8x512xf32>
    %c0_3 = arith.constant 0 : index
    %c0_4 = arith.constant 0 : index
    %3 = vector.load %arg3[%c0_3, %c0_4] : memref<1x512xf32, #tpu.memory_space<vmem>>, vector<1x512xf32>
    %4 = vector.broadcast %3 : vector<1x512xf32> to vector<8x512xf32>
    %5 = arith.addf %2, %4 : vector<8x512xf32>
    %cst_5 = arith.constant 5.000000e-01 : f32
    %6 = vector.broadcast %cst_5 : f32 to vector<8x512xf32>
    %7 = arith.mulf %6, %5 : vector<8x512xf32>
    %8 = math.tanh %7 : vector<8x512xf32>
    %cst_6 = arith.constant 5.000000e-01 : f32
    %9 = vector.broadcast %cst_6 : f32 to vector<8x512xf32>
    %10 = arith.mulf %9, %8 : vector<8x512xf32>
    %cst_7 = arith.constant 5.000000e-01 : f32
    %11 = vector.broadcast %cst_7 : f32 to vector<8x512xf32>
    %12 = arith.addf %10, %11 : vector<8x512xf32>
    %13 = arith.truncf %12 : vector<8x512xf32> to vector<8x512xbf16>
    %c0_8 = arith.constant 0 : index
    %c0_9 = arith.constant 0 : index
    %14 = vector.load %arg4[%c0_8, %c0_9] : memref<512x128xbf16, #tpu.memory_space<vmem>>, vector<512x128xbf16>
    %cst_10 = arith.constant dense<0.000000e+00> : vector<8x128xf32>
    %15 = tpu.matmul %13, %14, %cst_10 {dimension_numbers = #tpu.dot_dimension_numbers<[1], [0], [0], [1], [0, 0, 1, 1], [], []>} : vector<8x512xbf16>, vector<512x128xbf16>, vector<8x128xf32> -> vector<8x128xf32>
    %c0_11 = arith.constant 0 : index
    %c0_12 = arith.constant 0 : index
    %16 = vector.load %arg5[%c0_11, %c0_12] : memref<1x128xf32, #tpu.memory_space<vmem>>, vector<1x128xf32>
    %17 = vector.broadcast %16 : vector<1x128xf32> to vector<8x128xf32>
    %18 = arith.addf %15, %17 : vector<8x128xf32>
    %cst_13 = arith.constant 5.000000e-01 : f32
    %19 = vector.broadcast %cst_13 : f32 to vector<8x128xf32>
    %20 = arith.mulf %19, %18 : vector<8x128xf32>
    %21 = math.tanh %20 : vector<8x128xf32>
    %cst_14 = arith.constant 5.000000e-01 : f32
    %22 = vector.broadcast %cst_14 : f32 to vector<8x128xf32>
    %23 = arith.mulf %22, %21 : vector<8x128xf32>
    %cst_15 = arith.constant 5.000000e-01 : f32
    %24 = vector.broadcast %cst_15 : f32 to vector<8x128xf32>
    %25 = arith.addf %23, %24 : vector<8x128xf32>
    %26 = arith.truncf %25 : vector<8x128xf32> to vector<8x128xbf16>
    %c0_16 = arith.constant 0 : index
    %c0_17 = arith.constant 0 : index
    %27 = vector.load %arg6[%c0_16, %c0_17] : memref<128x128xbf16, #tpu.memory_space<vmem>>, vector<128x128xbf16>
    %cst_18 = arith.constant dense<0.000000e+00> : vector<8x128xf32>
    %28 = tpu.matmul %26, %27, %cst_18 {dimension_numbers = #tpu.dot_dimension_numbers<[1], [0], [0], [1], [0, 0, 1, 1], [], []>} : vector<8x128xbf16>, vector<128x128xbf16>, vector<8x128xf32> -> vector<8x128xf32>
    %c0_19 = arith.constant 0 : index
    %c0_20 = arith.constant 0 : index
    %29 = vector.load %arg7[%c0_19, %c0_20] : memref<1x128xf32, #tpu.memory_space<vmem>>, vector<1x128xf32>
    %30 = vector.broadcast %29 : vector<1x128xf32> to vector<8x128xf32>
    %31 = arith.addf %28, %30 : vector<8x128xf32>
    %cst_21 = arith.constant 5.000000e-01 : f32
    %32 = vector.broadcast %cst_21 : f32 to vector<8x128xf32>
    %33 = arith.mulf %32, %31 : vector<8x128xf32>
    %34 = math.tanh %33 : vector<8x128xf32>
    %cst_22 = arith.constant 5.000000e-01 : f32
    %35 = vector.broadcast %cst_22 : f32 to vector<8x128xf32>
    %36 = arith.mulf %35, %34 : vector<8x128xf32>
    %cst_23 = arith.constant 5.000000e-01 : f32
    %37 = vector.broadcast %cst_23 : f32 to vector<8x128xf32>
    %38 = arith.addf %36, %37 : vector<8x128xf32>
    %39 = arith.truncf %38 : vector<8x128xf32> to vector<8x128xbf16>
    %c0_24 = arith.constant 0 : index
    %c0_25 = arith.constant 0 : index
    %40 = vector.load %arg8[%c0_24, %c0_25] : memref<128x128xbf16, #tpu.memory_space<vmem>>, vector<128x128xbf16>
    %cst_26 = arith.constant dense<0.000000e+00> : vector<8x128xf32>
    %41 = tpu.matmul %39, %40, %cst_26 {dimension_numbers = #tpu.dot_dimension_numbers<[1], [0], [0], [1], [0, 0, 1, 1], [], []>} : vector<8x128xbf16>, vector<128x128xbf16>, vector<8x128xf32> -> vector<8x128xf32>
    %c0_27 = arith.constant 0 : index
    %c0_28 = arith.constant 0 : index
    %42 = vector.load %arg9[%c0_27, %c0_28] : memref<1x128xf32, #tpu.memory_space<vmem>>, vector<1x128xf32>
    %43 = vector.broadcast %42 : vector<1x128xf32> to vector<8x128xf32>
    %44 = arith.addf %41, %43 : vector<8x128xf32>
    %45 = arith.truncf %44 : vector<8x128xf32> to vector<8x128xbf16>
    %c0_29 = arith.constant 0 : index
    %c0_30 = arith.constant 0 : index
    %46 = vector.load %arg10[%c0_29, %c0_30] : memref<8x128xbf16, #tpu.memory_space<vmem>>, vector<8x128xbf16>
    tpu.vector_store %arg10[%c0_29, %c0_30], %45 {strides = array<i32>} : memref<8x128xbf16, #tpu.memory_space<vmem>>, vector<8x128xbf16>,
    return
  }
  func.func @transform_0(%arg0: i32) -> (i32, i32) {
    %c0_i32 = arith.constant 0 : i32
    %c0_i32_0 = arith.constant 0 : i32
    return %arg0, %c0_i32 : i32, i32
  }
  func.func @transform_1(%arg0: i32) -> (i32, i32) {
    %c0_i32 = arith.constant 0 : i32
    %c0_i32_0 = arith.constant 0 : i32
    %c0_i32_1 = arith.constant 0 : i32
    return %c0_i32, %c0_i32_0 : i32, i32
  }
  func.func @transform_2(%arg0: i32) -> (i32, i32) {
    %c0_i32 = arith.constant 0 : i32
    %c0_i32_0 = arith.constant 0 : i32
    %c0_i32_1 = arith.constant 0 : i32
    return %c0_i32, %c0_i32_0 : i32, i32
  }
  func.func @transform_3(%arg0: i32) -> (i32, i32) {
    %c0_i32 = arith.constant 0 : i32
    %c0_i32_0 = arith.constant 0 : i32
    %c0_i32_1 = arith.constant 0 : i32
    return %c0_i32, %c0_i32_0 : i32, i32
  }
  func.func @transform_4(%arg0: i32) -> (i32, i32) {
    %c0_i32 = arith.constant 0 : i32
    %c0_i32_0 = arith.constant 0 : i32
    %c0_i32_1 = arith.constant 0 : i32
    return %c0_i32, %c0_i32_0 : i32, i32
  }
  func.func @transform_5(%arg0: i32) -> (i32, i32) {
    %c0_i32 = arith.constant 0 : i32
    %c0_i32_0 = arith.constant 0 : i32
    %c0_i32_1 = arith.constant 0 : i32
    return %c0_i32, %c0_i32_0 : i32, i32
  }
  func.func @transform_6(%arg0: i32) -> (i32, i32) {
    %c0_i32 = arith.constant 0 : i32
    %c0_i32_0 = arith.constant 0 : i32
    %c0_i32_1 = arith.constant 0 : i32
    return %c0_i32, %c0_i32_0 : i32, i32
  }
  func.func @transform_7(%arg0: i32) -> (i32, i32) {
    %c0_i32 = arith.constant 0 : i32
    %c0_i32_0 = arith.constant 0 : i32
    %c0_i32_1 = arith.constant 0 : i32
    return %c0_i32, %c0_i32_0 : i32, i32
  }
  func.func @transform_8(%arg0: i32) -> (i32, i32) {
    %c0_i32 = arith.constant 0 : i32
    %c0_i32_0 = arith.constant 0 : i32
    %c0_i32_1 = arith.constant 0 : i32
    return %c0_i32, %c0_i32_0 : i32, i32
  }
  func.func @transform_9(%arg0: i32) -> (i32, i32) {
    %c0_i32 = arith.constant 0 : i32
    %c0_i32_0 = arith.constant 0 : i32
    return %arg0, %c0_i32 : i32, i32
  }
}

</mosaic_0001>

<llo_original>
// kernel: tpu_custom_call.1
$region0: #{tpu_custom_call.1}
  #allocation0 [shape = 'u32[]', space=smem, size = 0x4, offset = 0x4, fixed_abs, tag = 'smem constant byte address 0x4 - core index']
  #allocation1 [shape = 'u32[144,128]{1,0:T(1,128)}', space=vmem, size = 0x12000, scoped, tag = 'internal scratch']
  %s0 = inlined_call_operand.hbm [shape: bf16[8,128], index: 0, kind: input, shape index: {}]
  %s1 = inlined_call_operand.hbm [shape: bf16[128,512], index: 1, kind: input, shape index: {}]
  %s2 = inlined_call_operand.vmem [shape: f32[1,512], index: 2, kind: input, shape index: {}]
  %s3 = inlined_call_operand.hbm [shape: bf16[512,128], index: 3, kind: input, shape index: {}]
  %s4 = inlined_call_operand.vmem [shape: f32[1,128], index: 4, kind: input, shape index: {}]
  %s5 = inlined_call_operand.hbm [shape: bf16[128,128], index: 5, kind: input, shape index: {}]
  %s6 = inlined_call_operand.vmem [shape: f32[1,128], index: 6, kind: input, shape index: {}]
  %s7 = inlined_call_operand.hbm [shape: bf16[128,128], index: 7, kind: input, shape index: {}]
  %s8 = inlined_call_operand.vmem [shape: f32[1,128], index: 8, kind: input, shape index: {}]
  %s9 = inlined_call_operand.hbm [shape: bf16[8,128], index: 9, kind: output, shape index: {}]
  %s10 = sld [smem:[#allocation0]]
  $region66: #{tpu_custom_call.1} parent=0
    _
  %s12 = ssub.s32 1, %s10
  %s13 = scalar_select 0, %s12, %s10
  $region1: #{tpu_custom_call.1} parent=0
    #allocation2 [shape = 'u8[2048]{0}', space=vmem, size = 0x800, scoped, tag = 'input window, operand 0, single buffered']
    #allocation3 [shape = 's32[1]{0}', space=sflag, size = 0x4, scoped, tag = 'scoped memory for tpu_custom_call.1']
    #allocation4 [shape = 's32[1]{0}', space=sflag, size = 0x4, scoped, tag = 'scoped memory for tpu_custom_call.1']
    #allocation5 [shape = 'u8[131072]{0}', space=vmem, size = 0x20000, scoped, tag = 'input window, operand 1, single buffered']
    #allocation6 [shape = 's32[1]{0}', space=sflag, size = 0x4, scoped, tag = 'scoped memory for tpu_custom_call.1']
    #allocation7 [shape = 'u8[131072]{0}', space=vmem, size = 0x20000, scoped, tag = 'input window, operand 3, single buffered']
    #allocation8 [shape = 'u8[32768]{0}', space=vmem, size = 0x8000, scoped, tag = 'input window, operand 5, single buffered']
    #allocation9 [shape = 's32[1]{0}', space=sflag, size = 0x4, scoped, tag = 'scoped memory for tpu_custom_call.1']
    #allocation10 [shape = 'u8[32768]{0}', space=vmem, size = 0x8000, scoped, tag = 'input window, operand 7, single buffered']
    #allocation11 [shape = 'u8[2048]{0}', space=vmem, size = 0x800, scoped, tag = 'output window, operand 0, single buffered']
    %14 = vsyncpa [#allocation3], 0
    %15 = vsyncpa [#allocation6], 0
    %16 = vsyncpa [#allocation9], 0
    %17 = vsyncpa [#allocation4], 0
    // Predicated region
    $region2: #{tpu_custom_call.1} parent=1 // pred_check
      _
    $region3: #{tpu_custom_call.1} parent=1 // pred_check_branch
      %19 = sbr.rel (0) target = $region5
    $region4: #{tpu_custom_call.1} parent=1 // pred_region
      %s21 = ssub.s32 64, 64
      %22 = vsyncadd [#allocation3], %s21
      %s24 = sshll.u32 [#allocation2], 4
      %s25 = int_to_ptr.vmem [resolvable:$true] %s24
      %27 = dma.hbm_to_vmem [thread:$0]  %s0, 64, %s25, [#allocation3]
    $region5: #{tpu_custom_call.1} parent=1 // pred_fallthru
      _
    // Predicated region
    $region6: #{tpu_custom_call.1} parent=1 // pred_check
      _
    $region7: #{tpu_custom_call.1} parent=1 // pred_check_branch
      %29 = sbr.rel (0) target = $region9
    $region8: #{tpu_custom_call.1} parent=1 // pred_region
      %s31 = ssub.s32 4096, 4096
      %32 = vsyncadd [#allocation6], %s31
      %s33 = sshll.u32 [#allocation5], 4
      %s34 = int_to_ptr.vmem [resolvable:$true] %s33
      %39 = dma.hbm_to_vmem [thread:$0]  %s1, 4096, %s34, [#allocation6], 256, 256, 16
    $region9: #{tpu_custom_call.1} parent=1 // pred_fallthru
      _
    // Predicated region
    $region10: #{tpu_custom_call.1} parent=1 // pred_check
      _
    $region11: #{tpu_custom_call.1} parent=1 // pred_check_branch
      %41 = sbr.rel (0) target = $region13
    $region12: #{tpu_custom_call.1} parent=1 // pred_region
      _
    $region13: #{tpu_custom_call.1} parent=1 // pred_fallthru
      _
    // Predicated region
    $region14: #{tpu_custom_call.1} parent=1 // pred_check
      _
    $region15: #{tpu_custom_call.1} parent=1 // pred_check_branch
      %43 = sbr.rel (0) target = $region17
    $region16: #{tpu_custom_call.1} parent=1 // pred_region
      %s45 = ssub.s32 4096, 4096
      %46 = vsyncadd [#allocation6], %s45
      %s47 = sshll.u32 [#allocation7], 4
      %s48 = int_to_ptr.vmem [resolvable:$true] %s47
      %53 = dma.hbm_to_vmem [thread:$0]  %s3, 4096, %s48, [#allocation6], 64, 64, 4
    $region17: #{tpu_custom_call.1} parent=1 // pred_fallthru
      _
    // Predicated region
    $region18: #{tpu_custom_call.1} parent=1 // pred_check
      _
    $region19: #{tpu_custom_call.1} parent=1 // pred_check_branch
      %55 = sbr.rel (0) target = $region21
    $region20: #{tpu_custom_call.1} parent=1 // pred_region
      _
    $region21: #{tpu_custom_call.1} parent=1 // pred_fallthru
      _
    // Predicated region
    $region22: #{tpu_custom_call.1} parent=1 // pred_check
      _
    $region23: #{tpu_custom_call.1} parent=1 // pred_check_branch
      %57 = sbr.rel (0) target = $region25
    $region24: #{tpu_custom_call.1} parent=1 // pred_region
      %s59 = ssub.s32 1024, 1024
      %60 = vsyncadd [#allocation9], %s59
      %s61 = sshll.u32 [#allocation8], 4
      %s62 = int_to_ptr.vmem [resolvable:$true] %s61
      %67 = dma.hbm_to_vmem [thread:$0]  %s5, 1024, %s62, [#allocation9], 64, 64, 4
    $region25: #{tpu_custom_call.1} parent=1 // pred_fallthru
      _
    // Predicated region
    $region26: #{tpu_custom_call.1} parent=1 // pred_check
      _
    $region27: #{tpu_custom_call.1} parent=1 // pred_check_branch
      %69 = sbr.rel (0) target = $region29
    $region28: #{tpu_custom_call.1} parent=1 // pred_region
      _
    $region29: #{tpu_custom_call.1} parent=1 // pred_fallthru
      _
    // Predicated region
    $region30: #{tpu_custom_call.1} parent=1 // pred_check
      _
    $region31: #{tpu_custom_call.1} parent=1 // pred_check_branch
      %71 = sbr.rel (0) target = $region33
    $region32: #{tpu_custom_call.1} parent=1 // pred_region
      %s73 = ssub.s32 1024, 1024
      %74 = vsyncadd [#allocation9], %s73
      %s75 = sshll.u32 [#allocation10], 4
      %s76 = int_to_ptr.vmem [resolvable:$true] %s75
      %81 = dma.hbm_to_vmem [thread:$0]  %s7, 1024, %s76, [#allocation9], 64, 64, 4
    $region33: #{tpu_custom_call.1} parent=1 // pred_fallthru
      _
    // Predicated region
    $region34: #{tpu_custom_call.1} parent=1 // pred_check
      _
    $region35: #{tpu_custom_call.1} parent=1 // pred_check_branch
      %83 = sbr.rel (0) target = $region37
    $region36: #{tpu_custom_call.1} parent=1 // pred_region
      _
    $region37: #{tpu_custom_call.1} parent=1 // pred_fallthru
      _
    // Predicated region
    $region38: #{tpu_custom_call.1} parent=1 // pred_check
      _
    $region39: #{tpu_custom_call.1} parent=1 // pred_check_branch
      %85 = sbr.rel (0) target = $region41
    $region40: #{tpu_custom_call.1} parent=1 // pred_region
      %86 = dma.done [#allocation3], 64
    $region41: #{tpu_custom_call.1} parent=1 // pred_fallthru
      _
    // Predicated region
    $region42: #{tpu_custom_call.1} parent=1 // pred_check
      _
    $region43: #{tpu_custom_call.1} parent=1 // pred_check_branch
      %88 = sbr.rel (0) target = $region45
    $region44: #{tpu_custom_call.1} parent=1 // pred_region
      %89 = dma.done [#allocation6], 4096
    $region45: #{tpu_custom_call.1} parent=1 // pred_fallthru
      _
    // Predicated region
    $region46: #{tpu_custom_call.1} parent=1 // pred_check
      _
    $region47: #{tpu_custom_call.1} parent=1 // pred_check_branch
      %91 = sbr.rel (0) target = $region49
    $region48: #{tpu_custom_call.1} parent=1 // pred_region
      %92 = dma.done [#allocation6], 4096
    $region49: #{tpu_custom_call.1} parent=1 // pred_fallthru
      _
    // Predicated region
    $region50: #{tpu_custom_call.1} parent=1 // pred_check
      _
    $region51: #{tpu_custom_call.1} parent=1 // pred_check_branch
      %94 = sbr.rel (0) target = $region53
    $region52: #{tpu_custom_call.1} parent=1 // pred_region
      %95 = dma.done [#allocation9], 1024
    $region53: #{tpu_custom_call.1} parent=1 // pred_fallthru
      _
    // Predicated region
    $region54: #{tpu_custom_call.1} parent=1 // pred_check
      _
    $region55: #{tpu_custom_call.1} parent=1 // pred_check_branch
      %97 = sbr.rel (0) target = $region57
    $region56: #{tpu_custom_call.1} parent=1 // pred_region
      %98 = dma.done [#allocation9], 1024
    $region57: #{tpu_custom_call.1} parent=1 // pred_fallthru
      _
    %v100 = vld [vmem:[#allocation2] sm:$0xf]
    %v101 = vld [vmem:[#allocation5] sm:$0xff]
    %v102 = vld [vmem:[#allocation5 + $0x8] sm:$0xff]
    %v103 = vld [vmem:[#allocation5 + $0x10] sm:$0xff]
    %v104 = vld [vmem:[#allocation5 + $0x18] sm:$0xff]
    %v105 = vld [vmem:[#allocation5 + $0x20] sm:$0xff]
    %v106 = vld [vmem:[#allocation5 + $0x28] sm:$0xff]
    %v107 = vld [vmem:[#allocation5 + $0x30] sm:$0xff]
    %v108 = vld [vmem:[#allocation5 + $0x38] sm:$0xff]
    %v109 = vld [vmem:[#allocation5 + $0x40] sm:$0xff]
    %v110 = vld [vmem:[#allocation5 + $0x48] sm:$0xff]
    %v111 = vld [vmem:[#allocation5 + $0x50] sm:$0xff]
    %v112 = vld [vmem:[#allocation5 + $0x58] sm:$0xff]
    %v113 = vld [vmem:[#allocation5 + $0x60] sm:$0xff]
    %v114 = vld [vmem:[#allocation5 + $0x68] sm:$0xff]
    %v115 = vld [vmem:[#allocation5 + $0x70] sm:$0xff]
    %v116 = vld [vmem:[#allocation5 + $0x78] sm:$0xff]
    %v117 = vld [vmem:[#allocation5 + $0x80] sm:$0xff]
    %v118 = vld [vmem:[#allocation5 + $0x88] sm:$0xff]
    %v119 = vld [vmem:[#allocation5 + $0x90] sm:$0xff]
    %v120 = vld [vmem:[#allocation5 + $0x98] sm:$0xff]
    %v121 = vld [vmem:[#allocation5 + $0xa0] sm:$0xff]
    %v122 = vld [vmem:[#allocation5 + $0xa8] sm:$0xff]
    %v123 = vld [vmem:[#allocation5 + $0xb0] sm:$0xff]
    %v124 = vld [vmem:[#allocation5 + $0xb8] sm:$0xff]
    %v125 = vld [vmem:[#allocation5 + $0xc0] sm:$0xff]
    %v126 = vld [vmem:[#allocation5 + $0xc8] sm:$0xff]
    %v127 = vld [vmem:[#allocation5 + $0xd0] sm:$0xff]
    %v128 = vld [vmem:[#allocation5 + $0xd8] sm:$0xff]
    %v129 = vld [vmem:[#allocation5 + $0xe0] sm:$0xff]
    %v130 = vld [vmem:[#allocation5 + $0xe8] sm:$0xff]
    %v131 = vld [vmem:[#allocation5 + $0xf0] sm:$0xff]
    %v132 = vld [vmem:[#allocation5 + $0xf8] sm:$0xff]
    %v133 = vld [vmem:[%s2] sm:$0xf]
    %v135 = vlaneseq
    %v136 = vshrl.u32 %v135, 7
    %v137 = vsub.s32 0, %v136
    %v138 = vrot.slane %v133, %v137
    %v139 = vlaneseq
    %v140 = vshrl.u32 %v139, 7
    %v141 = vsub.s32 1, %v140
    %v142 = vrot.slane %v133, %v141
    %v143 = vlaneseq
    %v144 = vshrl.u32 %v143, 7
    %v145 = vsub.s32 2, %v144
    %v146 = vrot.slane %v133, %v145
    %v147 = vlaneseq
    %v148 = vshrl.u32 %v147, 7
    %v149 = vsub.s32 3, %v148
    %v150 = vrot.slane %v133, %v149
    %v187 = vunpack.c.l.b16 %v101
    %v188 = vunpack.c.h.b16 %v101
    %v189 = vunpack.c.l.b16 %v102
    %v190 = vunpack.c.h.b16 %v102
    %v191 = vunpack.c.l.b16 %v103
    %v192 = vunpack.c.h.b16 %v103
    %v193 = vunpack.c.l.b16 %v104
    %v194 = vunpack.c.h.b16 %v104
    %v195 = vunpack.c.l.b16 %v105
    %v196 = vunpack.c.h.b16 %v105
    %v197 = vunpack.c.l.b16 %v106
    %v198 = vunpack.c.h.b16 %v106
    %v199 = vunpack.c.l.b16 %v107
    %v200 = vunpack.c.h.b16 %v107
    %v201 = vunpack.c.l.b16 %v108
    %v202 = vunpack.c.h.b16 %v108
    %v203 = vunpack.c.l.b16 %v109
    %v204 = vunpack.c.h.b16 %v109
    %v205 = vunpack.c.l.b16 %v110
    %v206 = vunpack.c.h.b16 %v110
    %v207 = vunpack.c.l.b16 %v111
    %v208 = vunpack.c.h.b16 %v111
    %v209 = vunpack.c.l.b16 %v112
    %v210 = vunpack.c.h.b16 %v112
    %v211 = vunpack.c.l.b16 %v113
    %v212 = vunpack.c.h.b16 %v113
    %v213 = vunpack.c.l.b16 %v114
    %v214 = vunpack.c.h.b16 %v114
    %v215 = vunpack.c.l.b16 %v115
    %v216 = vunpack.c.h.b16 %v115
    %v217 = vunpack.c.l.b16 %v116
    %v218 = vunpack.c.h.b16 %v116
    %v219 = vunpack.c.l.b16 %v117
    %v220 = vunpack.c.h.b16 %v117
    %v221 = vunpack.c.l.b16 %v118
    %v222 = vunpack.c.h.b16 %v118
    %v223 = vunpack.c.l.b16 %v119
    %v224 = vunpack.c.h.b16 %v119
    %v225 = vunpack.c.l.b16 %v120
    %v226 = vunpack.c.h.b16 %v120
    %v227 = vunpack.c.l.b16 %v121
    %v228 = vunpack.c.h.b16 %v121
    %v229 = vunpack.c.l.b16 %v122
    %v230 = vunpack.c.h.b16 %v122
    %v231 = vunpack.c.l.b16 %v123
    %v232 = vunpack.c.h.b16 %v123
    %v233 = vunpack.c.l.b16 %v124
    %v234 = vunpack.c.h.b16 %v124
    %v235 = vunpack.c.l.b16 %v125
    %v236 = vunpack.c.h.b16 %v125
    %v237 = vunpack.c.l.b16 %v126
    %v238 = vunpack.c.h.b16 %v126
    %v239 = vunpack.c.l.b16 %v127
    %v240 = vunpack.c.h.b16 %v127
    %v241 = vunpack.c.l.b16 %v128
    %v242 = vunpack.c.h.b16 %v128
    %v243 = vunpack.c.l.b16 %v129
    %v244 = vunpack.c.h.b16 %v129
    %v245 = vunpack.c.l.b16 %v130
    %v246 = vunpack.c.h.b16 %v130
    %v247 = vunpack.c.l.b16 %v131
    %v248 = vunpack.c.h.b16 %v131
    %v249 = vunpack.c.l.b16 %v132
    %v250 = vunpack.c.h.b16 %v132
    %v251 = vpack.c.b16 %v191, %v187
    %v252 = vpack.c.b16 %v192, %v188
    %v253 = vpack.c.b16 %v193, %v189
    %v254 = vpack.c.b16 %v194, %v190
    %v255 = vpack.c.b16 %v199, %v195
    %v256 = vpack.c.b16 %v200, %v196
    %v257 = vpack.c.b16 %v201, %v197
    %v258 = vpack.c.b16 %v202, %v198
    %v259 = vpack.c.b16 %v207, %v203
    %v260 = vpack.c.b16 %v208, %v204
    %v261 = vpack.c.b16 %v209, %v205
    %v262 = vpack.c.b16 %v210, %v206
    %v263 = vpack.c.b16 %v215, %v211
    %v264 = vpack.c.b16 %v216, %v212
    %v265 = vpack.c.b16 %v217, %v213
    %v266 = vpack.c.b16 %v218, %v214
    %v267 = vpack.c.b16 %v223, %v219
    %v268 = vpack.c.b16 %v224, %v220
    %v269 = vpack.c.b16 %v225, %v221
    %v270 = vpack.c.b16 %v226, %v222
    %v271 = vpack.c.b16 %v231, %v227
    %v272 = vpack.c.b16 %v232, %v228
    %v273 = vpack.c.b16 %v233, %v229
    %v274 = vpack.c.b16 %v234, %v230
    %v275 = vpack.c.b16 %v239, %v235
    %v276 = vpack.c.b16 %v240, %v236
    %v277 = vpack.c.b16 %v241, %v237
    %v278 = vpack.c.b16 %v242, %v238
    %v279 = vpack.c.b16 %v247, %v243
    %v280 = vpack.c.b16 %v248, %v244
    %v281 = vpack.c.b16 %v249, %v245
    %v282 = vpack.c.b16 %v250, %v246
    %315 = vmatprep.subr.bf16.mxu0 %v252
    %316 = vmatpush1.bf16.msra.mxu0 %v251
    %317 = vmatprep.subr.bf16.mxu0 %v256
    %318 = vmatpush1.bf16.msra.mxu0 %v255
    %319 = vmatprep.subr.bf16.mxu0 %v260
    %320 = vmatpush1.bf16.msra.mxu0 %v259
    %321 = vmatprep.subr.bf16.mxu0 %v264
    %322 = vmatpush1.bf16.msra.mxu0 %v263
    %323 = vmatprep.subr.bf16.mxu0 %v268
    %324 = vmatpush1.bf16.msra.mxu0 %v267
    %325 = vmatprep.subr.bf16.mxu0 %v272
    %326 = vmatpush1.bf16.msra.mxu0 %v271
    %327 = vmatprep.subr.bf16.mxu0 %v276
    %328 = vmatpush1.bf16.msra.mxu0 %v275
    %329 = vmatprep.subr.bf16.mxu0 %v280
    %330 = vmatpush1.bf16.msra.mxu0 %v279
    %331 = vmatprep.subr.bf16.mxu0 0
    %332 = vmatpush1.bf16.msra.mxu0 0
    %333 = vmatprep.subr.bf16.mxu0 0
    %334 = vmatpush1.bf16.msra.mxu0 0
    %335 = vmatprep.subr.bf16.mxu0 0
    %336 = vmatpush1.bf16.msra.mxu0 0
    %337 = vmatprep.subr.bf16.mxu0 0
    %338 = vmatpush1.bf16.msra.mxu0 0
    %339 = vmatprep.subr.bf16.mxu0 0
    %340 = vmatpush1.bf16.msra.mxu0 0
    %341 = vmatprep.subr.bf16.mxu0 0
    %342 = vmatpush1.bf16.msra.mxu0 0
    %343 = vmatprep.subr.bf16.mxu0 0
    %344 = vmatpush1.bf16.msra.mxu0 0
    %345 = vmatprep.subr.bf16.mxu0 0
    %346 = vmatpush1.bf16.msra.mxu0 0
    %347 = vmatprep.mubr.bf16.mxu0 0
    %348 = vmatmul.mubr.bf16.gmra.mrb[0].mxu0 %v100
    %v349 = vpop.f32.mrb[0].mxu0
    %v350 = vadd.f32 %v138, %v349
    %v351 = vpop.f32.mrb[0].mxu0
    %v352 = vadd.f32 %v142, %v351
    %v353 = vpop.f32.mrb[0].mxu0
    %v354 = vpop.f32.mrb[0].mxu0
    %355 = vdwg.mxu0
    %356 = vmatprep.subr.bf16.mxu0 %v254
    %357 = vmatpush1.bf16.msra.mxu0 %v253
    %358 = vmatprep.subr.bf16.mxu0 %v258
    %359 = vmatpush1.bf16.msra.mxu0 %v257
    %360 = vmatprep.subr.bf16.mxu0 %v262
    %361 = vmatpush1.bf16.msra.mxu0 %v261
    %362 = vmatprep.subr.bf16.mxu0 %v266
    %363 = vmatpush1.bf16.msra.mxu0 %v265
    %364 = vmatprep.subr.bf16.mxu0 %v270
    %365 = vmatpush1.bf16.msra.mxu0 %v269
    %366 = vmatprep.subr.bf16.mxu0 %v274
    %367 = vmatpush1.bf16.msra.mxu0 %v273
    %368 = vmatprep.subr.bf16.mxu0 %v278
    %369 = vmatpush1.bf16.msra.mxu0 %v277
    %370 = vmatprep.subr.bf16.mxu0 %v282
    %371 = vmatpush1.bf16.msra.mxu0 %v281
    %372 = vmatprep.subr.bf16.mxu0 0
    %373 = vmatpush1.bf16.msra.mxu0 0
    %374 = vmatprep.subr.bf16.mxu0 0
    %375 = vmatpush1.bf16.msra.mxu0 0
    %376 = vmatprep.subr.bf16.mxu0 0
    %377 = vmatpush1.bf16.msra.mxu0 0
    %378 = vmatprep.subr.bf16.mxu0 0
    %379 = vmatpush1.bf16.msra.mxu0 0
    %380 = vmatprep.subr.bf16.mxu0 0
    %381 = vmatpush1.bf16.msra.mxu0 0
    %382 = vmatprep.subr.bf16.mxu0 0
    %383 = vmatpush1.bf16.msra.mxu0 0
    %384 = vmatprep.subr.bf16.mxu0 0
    %385 = vmatpush1.bf16.msra.mxu0 0
    %386 = vmatprep.subr.bf16.mxu0 0
    %387 = vmatpush1.bf16.msra.mxu0 0
    %388 = vmatprep.mubr.bf16.mxu0 0
    %389 = vmatmul.mubr.bf16.gmra.mrb[0].mxu0 %v100
    %v390 = vpop.f32.mrb[0].mxu0
    %v391 = vadd.f32 %v146, %v390
    %v392 = vpop.f32.mrb[0].mxu0
    %v393 = vadd.f32 %v150, %v392
    %v394 = vpop.f32.mrb[0].mxu0
    %v395 = vpop.f32.mrb[0].mxu0
    %396 = vdwg.mxu0
    %v397 = vmul.f32 %v350, 0.5
    %v398 = vmul.f32 %v352, 0.5
    %v399 = vmul.f32 %v391, 0.5
    %v400 = vmul.f32 %v393, 0.5
    %v401 = vtanh.pop %v397
    %v402 = vtanh.pop %v398
    %v403 = vtanh.pop %v399
    %v404 = vtanh.pop %v400
    %v405 = vmul.f32 %v401, 0.5
    %v406 = vmul.f32 %v402, 0.5
    %v407 = vmul.f32 %v403, 0.5
    %v408 = vmul.f32 %v404, 0.5
    %v409 = vadd.f32 %v405, 0.5
    %v410 = vadd.f32 %v406, 0.5
    %v411 = vadd.f32 %v407, 0.5
    %v412 = vadd.f32 %v408, 0.5
    %v413 = vpack.c.bf16 %v409, %v409
    %v414 = vpack.c.bf16 %v410, %v410
    %v415 = vpack.c.bf16 %v411, %v411
    %v416 = vpack.c.bf16 %v412, %v412
    %v417 = vld [vmem:[#allocation7] sm:$0xf]
    %v418 = vld [vmem:[#allocation7 + $0x4] sm:$0xf]
    %v419 = vld [vmem:[#allocation7 + $0x8] sm:$0xf]
    %v420 = vld [vmem:[#allocation7 + $0xc] sm:$0xf]
    %v421 = vld [vmem:[#allocation7 + $0x10] sm:$0xf]
    %v422 = vld [vmem:[#allocation7 + $0x14] sm:$0xf]
    %v423 = vld [vmem:[#allocation7 + $0x18] sm:$0xf]
    %v424 = vld [vmem:[#allocation7 + $0x1c] sm:$0xf]
    %v425 = vld [vmem:[#allocation7 + $0x20] sm:$0xf]
    %v426 = vld [vmem:[#allocation7 + $0x24] sm:$0xf]
    %v427 = vld [vmem:[#allocation7 + $0x28] sm:$0xf]
    %v428 = vld [vmem:[#allocation7 + $0x2c] sm:$0xf]
    %v429 = vld [vmem:[#allocation7 + $0x30] sm:$0xf]
    %v430 = vld [vmem:[#allocation7 + $0x34] sm:$0xf]
    %v431 = vld [vmem:[#allocation7 + $0x38] sm:$0xf]
    %v432 = vld [vmem:[#allocation7 + $0x3c] sm:$0xf]
    %v433 = vld [vmem:[#allocation7 + $0x40] sm:$0xf]
    %v434 = vld [vmem:[#allocation7 + $0x44] sm:$0xf]
    %v435 = vld [vmem:[#allocation7 + $0x48] sm:$0xf]
    %v436 = vld [vmem:[#allocation7 + $0x4c] sm:$0xf]
    %v437 = vld [vmem:[#allocation7 + $0x50] sm:$0xf]
    %v438 = vld [vmem:[#allocation7 + $0x54] sm:$0xf]
    %v439 = vld [vmem:[#allocation7 + $0x58] sm:$0xf]
    %v440 = vld [vmem:[#allocation7 + $0x5c] sm:$0xf]
    %v441 = vld [vmem:[#allocation7 + $0x60] sm:$0xf]
    %v442 = vld [vmem:[#allocation7 + $0x64] sm:$0xf]
    %v443 = vld [vmem:[#allocation7 + $0x68] sm:$0xf]
    %v444 = vld [vmem:[#allocation7 + $0x6c] sm:$0xf]
    %v445 = vld [vmem:[#allocation7 + $0x70] sm:$0xf]
    %v446 = vld [vmem:[#allocation7 + $0x74] sm:$0xf]
    %v447 = vld [vmem:[#allocation7 + $0x78] sm:$0xf]
    %v448 = vld [vmem:[#allocation7 + $0x7c] sm:$0xf]
    %v449 = vld [vmem:[#allocation7 + $0x80] sm:$0xf]
    %v450 = vld [vmem:[#allocation7 + $0x84] sm:$0xf]
    %v451 = vld [vmem:[#allocation7 + $0x88] sm:$0xf]
    %v452 = vld [vmem:[#allocation7 + $0x8c] sm:$0xf]
    %v453 = vld [vmem:[#allocation7 + $0x90] sm:$0xf]
    %v454 = vld [vmem:[#allocation7 + $0x94] sm:$0xf]
    %v455 = vld [vmem:[#allocation7 + $0x98] sm:$0xf]
    %v456 = vld [vmem:[#allocation7 + $0x9c] sm:$0xf]
    %v457 = vld [vmem:[#allocation7 + $0xa0] sm:$0xf]
    %v458 = vld [vmem:[#allocation7 + $0xa4] sm:$0xf]
    %v459 = vld [vmem:[#allocation7 + $0xa8] sm:$0xf]
    %v460 = vld [vmem:[#allocation7 + $0xac] sm:$0xf]
    %v461 = vld [vmem:[#allocation7 + $0xb0] sm:$0xf]
    %v462 = vld [vmem:[#allocation7 + $0xb4] sm:$0xf]
    %v463 = vld [vmem:[#allocation7 + $0xb8] sm:$0xf]
    %v464 = vld [vmem:[#allocation7 + $0xbc] sm:$0xf]
    %v465 = vld [vmem:[#allocation7 + $0xc0] sm:$0xf]
    %v466 = vld [vmem:[#allocation7 + $0xc4] sm:$0xf]
    %v467 = vld [vmem:[#allocation7 + $0xc8] sm:$0xf]
    %v468 = vld [vmem:[#allocation7 + $0xcc] sm:$0xf]
    %v469 = vld [vmem:[#allocation7 + $0xd0] sm:$0xf]
    %v470 = vld [vmem:[#allocation7 + $0xd4] sm:$0xf]
    %v471 = vld [vmem:[#allocation7 + $0xd8] sm:$0xf]
    %v472 = vld [vmem:[#allocation7 + $0xdc] sm:$0xf]
    %v473 = vld [vmem:[#allocation7 + $0xe0] sm:$0xf]
    %v474 = vld [vmem:[#allocation7 + $0xe4] sm:$0xf]
    %v475 = vld [vmem:[#allocation7 + $0xe8] sm:$0xf]
    %v476 = vld [vmem:[#allocation7 + $0xec] sm:$0xf]
    %v477 = vld [vmem:[#allocation7 + $0xf0] sm:$0xf]
    %v478 = vld [vmem:[#allocation7 + $0xf4] sm:$0xf]
    %v479 = vld [vmem:[#allocation7 + $0xf8] sm:$0xf]
    %v480 = vld [vmem:[#allocation7 + $0xfc] sm:$0xf]
    %v481 = vld [vmem:[%s4] sm:$0x1]
    %v483 = vlaneseq
    %v484 = vshrl.u32 %v483, 7
    %v485 = vsub.s32 0, %v484
    %v486 = vrot.slane %v481, %v485
    %v552 = vunpack.c.l.b16 %v417
    %v553 = vunpack.c.l.b16 %v418
    %v554 = vunpack.c.l.b16 %v419
    %v555 = vunpack.c.l.b16 %v420
    %v556 = vunpack.c.l.b16 %v421
    %v557 = vunpack.c.l.b16 %v422
    %v558 = vunpack.c.l.b16 %v423
    %v559 = vunpack.c.l.b16 %v424
    %v560 = vunpack.c.l.b16 %v425
    %v561 = vunpack.c.l.b16 %v426
    %v562 = vunpack.c.l.b16 %v427
    %v563 = vunpack.c.l.b16 %v428
    %v564 = vunpack.c.l.b16 %v429
    %v565 = vunpack.c.l.b16 %v430
    %v566 = vunpack.c.l.b16 %v431
    %v567 = vunpack.c.l.b16 %v432
    %v568 = vunpack.c.l.b16 %v433
    %v569 = vunpack.c.l.b16 %v434
    %v570 = vunpack.c.l.b16 %v435
    %v571 = vunpack.c.l.b16 %v436
    %v572 = vunpack.c.l.b16 %v437
    %v573 = vunpack.c.l.b16 %v438
    %v574 = vunpack.c.l.b16 %v439
    %v575 = vunpack.c.l.b16 %v440
    %v576 = vunpack.c.l.b16 %v441
    %v577 = vunpack.c.l.b16 %v442
    %v578 = vunpack.c.l.b16 %v443
    %v579 = vunpack.c.l.b16 %v444
    %v580 = vunpack.c.l.b16 %v445
    %v581 = vunpack.c.l.b16 %v446
    %v582 = vunpack.c.l.b16 %v447
    %v583 = vunpack.c.l.b16 %v448
    %v584 = vunpack.c.l.b16 %v449
    %v585 = vunpack.c.l.b16 %v450
    %v586 = vunpack.c.l.b16 %v451
    %v587 = vunpack.c.l.b16 %v452
    %v588 = vunpack.c.l.b16 %v453
    %v589 = vunpack.c.l.b16 %v454
    %v590 = vunpack.c.l.b16 %v455
    %v591 = vunpack.c.l.b16 %v456
    %v592 = vunpack.c.l.b16 %v457
    %v593 = vunpack.c.l.b16 %v458
    %v594 = vunpack.c.l.b16 %v459
    %v595 = vunpack.c.l.b16 %v460
    %v596 = vunpack.c.l.b16 %v461
    %v597 = vunpack.c.l.b16 %v462
    %v598 = vunpack.c.l.b16 %v463
    %v599 = vunpack.c.l.b16 %v464
    %v600 = vunpack.c.l.b16 %v465
    %v601 = vunpack.c.l.b16 %v466
    %v602 = vunpack.c.l.b16 %v467
    %v603 = vunpack.c.l.b16 %v468
    %v604 = vunpack.c.l.b16 %v469
    %v605 = vunpack.c.l.b16 %v470
    %v606 = vunpack.c.l.b16 %v471
    %v607 = vunpack.c.l.b16 %v472
    %v608 = vunpack.c.l.b16 %v473
    %v609 = vunpack.c.l.b16 %v474
    %v610 = vunpack.c.l.b16 %v475
    %v611 = vunpack.c.l.b16 %v476
    %v612 = vunpack.c.l.b16 %v477
    %v613 = vunpack.c.l.b16 %v478
    %v614 = vunpack.c.l.b16 %v479
    %v615 = vunpack.c.l.b16 %v480
    %v616 = vpack.c.b16 %v553, %v552
    %v617 = vpack.c.b16 %v555, %v554
    %v618 = vpack.c.b16 %v557, %v556
    %v619 = vpack.c.b16 %v559, %v558
    %v620 = vpack.c.b16 %v561, %v560
    %v621 = vpack.c.b16 %v563, %v562
    %v622 = vpack.c.b16 %v565, %v564
    %v623 = vpack.c.b16 %v567, %v566
    %v624 = vpack.c.b16 %v569, %v568
    %v625 = vpack.c.b16 %v571, %v570
    %v626 = vpack.c.b16 %v573, %v572
    %v627 = vpack.c.b16 %v575, %v574
    %v628 = vpack.c.b16 %v577, %v576
    %v629 = vpack.c.b16 %v579, %v578
    %v630 = vpack.c.b16 %v581, %v580
    %v631 = vpack.c.b16 %v583, %v582
    %v632 = vpack.c.b16 %v585, %v584
    %v633 = vpack.c.b16 %v587, %v586
    %v634 = vpack.c.b16 %v589, %v588
    %v635 = vpack.c.b16 %v591, %v590
    %v636 = vpack.c.b16 %v593, %v592
    %v637 = vpack.c.b16 %v595, %v594
    %v638 = vpack.c.b16 %v597, %v596
    %v639 = vpack.c.b16 %v599, %v598
    %v640 = vpack.c.b16 %v601, %v600
    %v641 = vpack.c.b16 %v603, %v602
    %v642 = vpack.c.b16 %v605, %v604
    %v643 = vpack.c.b16 %v607, %v606
    %v644 = vpack.c.b16 %v609, %v608
    %v645 = vpack.c.b16 %v611, %v610
    %v646 = vpack.c.b16 %v613, %v612
    %v647 = vpack.c.b16 %v615, %v614
    %680 = vmatprep.subr.bf16.mxu0 0
    %681 = vmatpush1.bf16.msra.mxu0 %v616
    %682 = vmatprep.subr.bf16.mxu0 0
    %683 = vmatpush1.bf16.msra.mxu0 %v617
    %684 = vmatprep.subr.bf16.mxu0 0
    %685 = vmatpush1.bf16.msra.mxu0 %v618
    %686 = vmatprep.subr.bf16.mxu0 0
    %687 = vmatpush1.bf16.msra.mxu0 %v619
    %688 = vmatprep.subr.bf16.mxu0 0
    %689 = vmatpush1.bf16.msra.mxu0 %v620
    %690 = vmatprep.subr.bf16.mxu0 0
    %691 = vmatpush1.bf16.msra.mxu0 %v621
    %692 = vmatprep.subr.bf16.mxu0 0
    %693 = vmatpush1.bf16.msra.mxu0 %v622
    %694 = vmatprep.subr.bf16.mxu0 0
    %695 = vmatpush1.bf16.msra.mxu0 %v623
    %696 = vmatprep.subr.bf16.mxu0 0
    %697 = vmatpush1.bf16.msra.mxu0 %v624
    %698 = vmatprep.subr.bf16.mxu0 0
    %699 = vmatpush1.bf16.msra.mxu0 %v625
    %700 = vmatprep.subr.bf16.mxu0 0
    %701 = vmatpush1.bf16.msra.mxu0 %v626
    %702 = vmatprep.subr.bf16.mxu0 0
    %703 = vmatpush1.bf16.msra.mxu0 %v627
    %704 = vmatprep.subr.bf16.mxu0 0
    %705 = vmatpush1.bf16.msra.mxu0 %v628
    %706 = vmatprep.subr.bf16.mxu0 0
    %707 = vmatpush1.bf16.msra.mxu0 %v629
    %708 = vmatprep.subr.bf16.mxu0 0
    %709 = vmatpush1.bf16.msra.mxu0 %v630
    %710 = vmatprep.subr.bf16.mxu0 0
    %711 = vmatpush1.bf16.msra.mxu0 %v631
    %712 = vmatprep.mubr.bf16.mxu0 %v414
    %713 = vmatmul.mubr.bf16.gmra.mrb[0].mxu0 %v413
    %v714 = vpop.f32.mrb[0].mxu0
    %v715 = vadd.f32 %v486, %v714
    %v716 = vpop.f32.mrb[0].mxu0
    %v717 = vpop.f32.mrb[0].mxu0
    %v718 = vpop.f32.mrb[0].mxu0
    %719 = vdwg.mxu0
    %720 = vmatprep.subr.bf16.mxu0 0
    %721 = vmatpush1.bf16.msra.mxu0 %v632
    %722 = vmatprep.subr.bf16.mxu0 0
    %723 = vmatpush1.bf16.msra.mxu0 %v633
    %724 = vmatprep.subr.bf16.mxu0 0
    %725 = vmatpush1.bf16.msra.mxu0 %v634
    %726 = vmatprep.subr.bf16.mxu0 0
    %727 = vmatpush1.bf16.msra.mxu0 %v635
    %728 = vmatprep.subr.bf16.mxu0 0
    %729 = vmatpush1.bf16.msra.mxu0 %v636
    %730 = vmatprep.subr.bf16.mxu0 0
    %731 = vmatpush1.bf16.msra.mxu0 %v637
    %732 = vmatprep.subr.bf16.mxu0 0
    %733 = vmatpush1.bf16.msra.mxu0 %v638
    %734 = vmatprep.subr.bf16.mxu0 0
    %735 = vmatpush1.bf16.msra.mxu0 %v639
    %736 = vmatprep.subr.bf16.mxu0 0
    %737 = vmatpush1.bf16.msra.mxu0 %v640
    %738 = vmatprep.subr.bf16.mxu0 0
    %739 = vmatpush1.bf16.msra.mxu0 %v641
    %740 = vmatprep.subr.bf16.mxu0 0
    %741 = vmatpush1.bf16.msra.mxu0 %v642
    %742 = vmatprep.subr.bf16.mxu0 0
    %743 = vmatpush1.bf16.msra.mxu0 %v643
    %744 = vmatprep.subr.bf16.mxu0 0
    %745 = vmatpush1.bf16.msra.mxu0 %v644
    %746 = vmatprep.subr.bf16.mxu0 0
    %747 = vmatpush1.bf16.msra.mxu0 %v645
    %748 = vmatprep.subr.bf16.mxu0 0
    %749 = vmatpush1.bf16.msra.mxu0 %v646
    %750 = vmatprep.subr.bf16.mxu0 0
    %751 = vmatpush1.bf16.msra.mxu0 %v647
    %752 = vmatprep.mubr.bf16.mxu0 %v416
    %753 = vmatmul.mubr.bf16.gmra.mrb[0].mxu0 %v415
    %v754 = vpop.f32.mrb[0].mxu0
    %v755 = vadd.f32 %v715, %v754
    %v756 = vpop.f32.mrb[0].mxu0
    %v757 = vpop.f32.mrb[0].mxu0
    %v758 = vpop.f32.mrb[0].mxu0
    %759 = vdwg.mxu0
    %v760 = vmul.f32 %v755, 0.5
    %v761 = vtanh.pop %v760
    %v762 = vmul.f32 %v761, 0.5
    %v763 = vadd.f32 %v762, 0.5
    %v764 = vpack.c.bf16 %v763, %v763
    %v765 = vld [vmem:[#allocation8] sm:$0xf]
    %v766 = vld [vmem:[#allocation8 + $0x4] sm:$0xf]
    %v767 = vld [vmem:[#allocation8 + $0x8] sm:$0xf]
    %v768 = vld [vmem:[#allocation8 + $0xc] sm:$0xf]
    %v769 = vld [vmem:[#allocation8 + $0x10] sm:$0xf]
    %v770 = vld [vmem:[#allocation8 + $0x14] sm:$0xf]
    %v771 = vld [vmem:[#allocation8 + $0x18] sm:$0xf]
    %v772 = vld [vmem:[#allocation8 + $0x1c] sm:$0xf]
    %v773 = vld [vmem:[#allocation8 + $0x20] sm:$0xf]
    %v774 = vld [vmem:[#allocation8 + $0x24] sm:$0xf]
    %v775 = vld [vmem:[#allocation8 + $0x28] sm:$0xf]
    %v776 = vld [vmem:[#allocation8 + $0x2c] sm:$0xf]
    %v777 = vld [vmem:[#allocation8 + $0x30] sm:$0xf]
    %v778 = vld [vmem:[#allocation8 + $0x34] sm:$0xf]
    %v779 = vld [vmem:[#allocation8 + $0x38] sm:$0xf]
    %v780 = vld [vmem:[#allocation8 + $0x3c] sm:$0xf]
    %v781 = vld [vmem:[%s6] sm:$0x1]
    %v783 = vlaneseq
    %v784 = vshrl.u32 %v783, 7
    %v785 = vsub.s32 0, %v784
    %v786 = vrot.slane %v781, %v785
    %v804 = vunpack.c.l.b16 %v765
    %v805 = vunpack.c.l.b16 %v766
    %v806 = vunpack.c.l.b16 %v767
    %v807 = vunpack.c.l.b16 %v768
    %v808 = vunpack.c.l.b16 %v769
    %v809 = vunpack.c.l.b16 %v770
    %v810 = vunpack.c.l.b16 %v771
    %v811 = vunpack.c.l.b16 %v772
    %v812 = vunpack.c.l.b16 %v773
    %v813 = vunpack.c.l.b16 %v774
    %v814 = vunpack.c.l.b16 %v775
    %v815 = vunpack.c.l.b16 %v776
    %v816 = vunpack.c.l.b16 %v777
    %v817 = vunpack.c.l.b16 %v778
    %v818 = vunpack.c.l.b16 %v779
    %v819 = vunpack.c.l.b16 %v780
    %v820 = vpack.c.b16 %v805, %v804
    %v821 = vpack.c.b16 %v807, %v806
    %v822 = vpack.c.b16 %v809, %v808
    %v823 = vpack.c.b16 %v811, %v810
    %v824 = vpack.c.b16 %v813, %v812
    %v825 = vpack.c.b16 %v815, %v814
    %v826 = vpack.c.b16 %v817, %v816
    %v827 = vpack.c.b16 %v819, %v818
    %836 = vmatprep.subr.bf16.mxu0 0
    %837 = vmatpush1.bf16.msra.mxu0 %v820
    %838 = vmatprep.subr.bf16.mxu0 0
    %839 = vmatpush1.bf16.msra.mxu0 %v821
    %840 = vmatprep.subr.bf16.mxu0 0
    %841 = vmatpush1.bf16.msra.mxu0 %v822
    %842 = vmatprep.subr.bf16.mxu0 0
    %843 = vmatpush1.bf16.msra.mxu0 %v823
    %844 = vmatprep.subr.bf16.mxu0 0
    %845 = vmatpush1.bf16.msra.mxu0 %v824
    %846 = vmatprep.subr.bf16.mxu0 0
    %847 = vmatpush1.bf16.msra.mxu0 %v825
    %848 = vmatprep.subr.bf16.mxu0 0
    %849 = vmatpush1.bf16.msra.mxu0 %v826
    %850 = vmatprep.subr.bf16.mxu0 0
    %851 = vmatpush1.bf16.msra.mxu0 %v827
    %852 = vmatprep.subr.bf16.mxu0 0
    %853 = vmatpush1.bf16.msra.mxu0 0
    %854 = vmatprep.subr.bf16.mxu0 0
    %855 = vmatpush1.bf16.msra.mxu0 0
    %856 = vmatprep.subr.bf16.mxu0 0
    %857 = vmatpush1.bf16.msra.mxu0 0
    %858 = vmatprep.subr.bf16.mxu0 0
    %859 = vmatpush1.bf16.msra.mxu0 0
    %860 = vmatprep.subr.bf16.mxu0 0
    %861 = vmatpush1.bf16.msra.mxu0 0
    %862 = vmatprep.subr.bf16.mxu0 0
    %863 = vmatpush1.bf16.msra.mxu0 0
    %864 = vmatprep.subr.bf16.mxu0 0
    %865 = vmatpush1.bf16.msra.mxu0 0
    %866 = vmatprep.subr.bf16.mxu0 0
    %867 = vmatpush1.bf16.msra.mxu0 0
    %868 = vmatprep.mubr.bf16.mxu0 0
    %869 = vmatmul.mubr.bf16.gmra.mrb[0].mxu0 %v764
    %v870 = vpop.f32.mrb[0].mxu0
    %v871 = vadd.f32 %v786, %v870
    %v872 = vpop.f32.mrb[0].mxu0
    %v873 = vpop.f32.mrb[0].mxu0
    %v874 = vpop.f32.mrb[0].mxu0
    %875 = vdwg.mxu0
    %v876 = vmul.f32 %v871, 0.5
    %v877 = vtanh.pop %v876
    %v878 = vmul.f32 %v877, 0.5
    %v879 = vadd.f32 %v878, 0.5
    %v880 = vpack.c.bf16 %v879, %v879
    %v881 = vld [vmem:[#allocation10] sm:$0xf]
    %v882 = vld [vmem:[#allocation10 + $0x4] sm:$0xf]
    %v883 = vld [vmem:[#allocation10 + $0x8] sm:$0xf]
    %v884 = vld [vmem:[#allocation10 + $0xc] sm:$0xf]
    %v885 = vld [vmem:[#allocation10 + $0x10] sm:$0xf]
    %v886 = vld [vmem:[#allocation10 + $0x14] sm:$0xf]
    %v887 = vld [vmem:[#allocation10 + $0x18] sm:$0xf]
    %v888 = vld [vmem:[#allocation10 + $0x1c] sm:$0xf]
    %v889 = vld [vmem:[#allocation10 + $0x20] sm:$0xf]
    %v890 = vld [vmem:[#allocation10 + $0x24] sm:$0xf]
    %v891 = vld [vmem:[#allocation10 + $0x28] sm:$0xf]
    %v892 = vld [vmem:[#allocation10 + $0x2c] sm:$0xf]
    %v893 = vld [vmem:[#allocation10 + $0x30] sm:$0xf]
    %v894 = vld [vmem:[#allocation10 + $0x34] sm:$0xf]
    %v895 = vld [vmem:[#allocation10 + $0x38] sm:$0xf]
    %v896 = vld [vmem:[#allocation10 + $0x3c] sm:$0xf]
    %v897 = vld [vmem:[%s8] sm:$0x1]
    %v899 = vlaneseq
    %v900 = vshrl.u32 %v899, 7
    %v901 = vsub.s32 0, %v900
    %v902 = vrot.slane %v897, %v901
    %v920 = vunpack.c.l.b16 %v881
    %v921 = vunpack.c.l.b16 %v882
    %v922 = vunpack.c.l.b16 %v883
    %v923 = vunpack.c.l.b16 %v884
    %v924 = vunpack.c.l.b16 %v885
    %v925 = vunpack.c.l.b16 %v886
    %v926 = vunpack.c.l.b16 %v887
    %v927 = vunpack.c.l.b16 %v888
    %v928 = vunpack.c.l.b16 %v889
    %v929 = vunpack.c.l.b16 %v890
    %v930 = vunpack.c.l.b16 %v891
    %v931 = vunpack.c.l.b16 %v892
    %v932 = vunpack.c.l.b16 %v893
    %v933 = vunpack.c.l.b16 %v894
    %v934 = vunpack.c.l.b16 %v895
    %v935 = vunpack.c.l.b16 %v896
    %v936 = vpack.c.b16 %v921, %v920
    %v937 = vpack.c.b16 %v923, %v922
    %v938 = vpack.c.b16 %v925, %v924
    %v939 = vpack.c.b16 %v927, %v926
    %v940 = vpack.c.b16 %v929, %v928
    %v941 = vpack.c.b16 %v931, %v930
    %v942 = vpack.c.b16 %v933, %v932
    %v943 = vpack.c.b16 %v935, %v934
    %952 = vmatprep.subr.bf16.mxu0 0
    %953 = vmatpush1.bf16.msra.mxu0 %v936
    %954 = vmatprep.subr.bf16.mxu0 0
    %955 = vmatpush1.bf16.msra.mxu0 %v937
    %956 = vmatprep.subr.bf16.mxu0 0
    %957 = vmatpush1.bf16.msra.mxu0 %v938
    %958 = vmatprep.subr.bf16.mxu0 0
    %959 = vmatpush1.bf16.msra.mxu0 %v939
    %960 = vmatprep.subr.bf16.mxu0 0
    %961 = vmatpush1.bf16.msra.mxu0 %v940
    %962 = vmatprep.subr.bf16.mxu0 0
    %963 = vmatpush1.bf16.msra.mxu0 %v941
    %964 = vmatprep.subr.bf16.mxu0 0
    %965 = vmatpush1.bf16.msra.mxu0 %v942
    %966 = vmatprep.subr.bf16.mxu0 0
    %967 = vmatpush1.bf16.msra.mxu0 %v943
    %968 = vmatprep.subr.bf16.mxu0 0
    %969 = vmatpush1.bf16.msra.mxu0 0
    %970 = vmatprep.subr.bf16.mxu0 0
    %971 = vmatpush1.bf16.msra.mxu0 0
    %972 = vmatprep.subr.bf16.mxu0 0
    %973 = vmatpush1.bf16.msra.mxu0 0
    %974 = vmatprep.subr.bf16.mxu0 0
    %975 = vmatpush1.bf16.msra.mxu0 0
    %976 = vmatprep.subr.bf16.mxu0 0
    %977 = vmatpush1.bf16.msra.mxu0 0
    %978 = vmatprep.subr.bf16.mxu0 0
    %979 = vmatpush1.bf16.msra.mxu0 0
    %980 = vmatprep.subr.bf16.mxu0 0
    %981 = vmatpush1.bf16.msra.mxu0 0
    %982 = vmatprep.subr.bf16.mxu0 0
    %983 = vmatpush1.bf16.msra.mxu0 0
    %984 = vmatprep.mubr.bf16.mxu0 0
    %985 = vmatmul.mubr.bf16.gmra.mrb[0].mxu0 %v880
    %v986 = vpop.f32.mrb[0].mxu0
    %v987 = vadd.f32 %v902, %v986
    %v988 = vpop.f32.mrb[0].mxu0
    %v989 = vpop.f32.mrb[0].mxu0
    %v990 = vpop.f32.mrb[0].mxu0
    %991 = vdwg.mxu0
    %v992 = vpack.c.bf16 %v987, %v987
    %993 = vst [vmem:[#allocation11] sm:$0xf] %v992
    // Predicated region
    $region58: #{tpu_custom_call.1} parent=1 // pred_check
      _
    $region59: #{tpu_custom_call.1} parent=1 // pred_check_branch
      %995 = sbr.rel (0) target = $region61
    $region60: #{tpu_custom_call.1} parent=1 // pred_region
      %s997 = ssub.s32 64, 64
      %998 = vsyncadd [#allocation4], %s997
      %s1000 = sshll.u32 [#allocation11], 4
      %s1001 = int_to_ptr.vmem [resolvable:$true] %s1000
      %1003 = dma.vmem_to_hbm [thread:$0]  %s1001, 64, %s9, [#allocation4]
    $region61: #{tpu_custom_call.1} parent=1 // pred_fallthru
      _
    // Predicated region
    $region62: #{tpu_custom_call.1} parent=1 // pred_check
      _
    $region63: #{tpu_custom_call.1} parent=1 // pred_check_branch
      %1005 = sbr.rel (0) target = $region65
    $region64: #{tpu_custom_call.1} parent=1 // pred_region
      %1006 = dma.done [#allocation4], 64
    $region65: #{tpu_custom_call.1} parent=1 // pred_fallthru
      _
    %1007 = vsyncpa [#allocation3], 1
    %1008 = vsyncpa [#allocation6], 1
    %1009 = vsyncpa [#allocation9], 1
    %1010 = vsyncpa [#allocation4], 1

</llo_original>
